<compile_context>
chip_gen: v7x
topology: tpu7x:2x2x1
jax: 0.10.0
libtpu: 0.0.40
codegen_flags: <defaults>
</compile_context>

<pallas_src>
import jax
import jax.numpy as jnp
from jax.experimental import pallas as pl
from jax.experimental.pallas import tpu as pltpu

_EPS = 1e-12  # matches torch.nn.functional.normalize default eps


def _l2norm_kernel(x_ref, o_ref):
    # x_ref / o_ref: (block_rows, D_padded) tile in VMEM
    x = x_ref[...].astype(jnp.float32)
    ss = jnp.sum(x * x, axis=-1, keepdims=True)            # (rows, 1)  XLU reduce
    # 1 / max(norm, eps) == rsqrt(max(ss, eps^2)); rsqrt runs on the EUP and
    # only touches the (rows, 1) column -> the full-tile op is one VPU multiply.
    inv = jax.lax.rsqrt(jnp.maximum(ss, _EPS * _EPS))       # (rows, 1)
    o_ref[...] = (x * inv).astype(o_ref.dtype)


def _sublane_multiple(dtype) -> int:
    # f32 -> 8, bf16 -> 16, int8/fp8 -> 32
    return max(8, 32 // jnp.dtype(dtype).itemsize)


def l2_normalize(x: jax.Array, block_rows: int | None = None) -> jax.Array:
    """L2-normalize a 2-D array along axis=1 (torch F.normalize(p=2, dim=1))."""
    assert x.ndim == 2, "l2_normalize expects (batch, features)"
    B, D = x.shape
    itemsize = jnp.dtype(x.dtype).itemsize
    sublane = _sublane_multiple(x.dtype)

    # Lane-pad features to a multiple of 128 (zeros don't affect the L2 norm).
    d_pad = (-D) % 128
    D_full = D + d_pad

    # Pick a ~2 MiB row tile (safe on v5e's 16 MiB scoped VMEM and v7x's
    # 64 MiB total), rounded to the sublane multiple for this dtype.
    if block_rows is None:
        target_bytes = 2 << 20
        block_rows = min(B, target_bytes // max(1, D_full * itemsize))
    block_rows = max(sublane, (block_rows // sublane) * sublane)

    # Pad batch so the grid tiles exactly (padded rows are zeros -> 0 output).
    b_pad = (-B) % block_rows
    B_full = B + b_pad

    if b_pad or d_pad:
        x_in = jnp.pad(x, ((0, b_pad), (0, d_pad)))
    else:
        x_in = x

    grid = (B_full // block_rows,)

    # TODO(synk): for very large D where a full-D row block exceeds the VMEM
    # budget (notably v7x's 64 MiB), add a D-chunk reduction grid axis with a
    # (block_rows, 1) f32 scratch accumulator instead of shrinking block_rows.
    out = pl.pallas_call(
        _l2norm_kernel,
        out_shape=jax.ShapeDtypeStruct((B_full, D_full), x.dtype),
        grid_spec=pltpu.PrefetchScalarGridSpec(
            num_scalar_prefetch=0,
            grid=grid,
            in_specs=[pl.BlockSpec((block_rows, D_full), lambda i: (i, 0))],
            out_specs=pl.BlockSpec((block_rows, D_full), lambda i: (i, 0)),
        ),
        compiler_params=pltpu.CompilerParams(
            dimension_semantics=("parallel",),
            vmem_limit_bytes=32 << 20,
        ),
    )(x_in)

    if b_pad or d_pad:
        out = out[:B, :D]
    return out


def _reference(x):
    norm = jnp.linalg.norm(x.astype(jnp.float32), axis=1, keepdims=True)
    return (x.astype(jnp.float32) / jnp.maximum(norm, _EPS)).astype(x.dtype)


if __name__ == "__main__":
    key = jax.random.PRNGKey(0)

    # Small shape consistent with the module: batch=8, hidden=32.
    B, D = 8, 32
    x = jax.random.normal(key, (B, D), dtype=jnp.float32)
    out = jax.block_until_ready(l2_normalize(x))
    ref = _reference(x)
    assert out.shape == x.shape and out.dtype == x.dtype
    assert jnp.allclose(out, ref, atol=2e-6, rtol=2e-6)

    # Ragged shape: exercises batch + lane padding paths.
    x2 = jax.random.normal(jax.random.PRNGKey(1), (10, 48), dtype=jnp.float32)
    out2 = jax.block_until_ready(l2_normalize(x2))
    ref2 = _reference(x2)
    assert out2.shape == x2.shape
    assert jnp.allclose(out2, ref2, atol=2e-6, rtol=2e-6)

    print("KERNEL_OK")
</pallas_src>

<mosaic_0001>
module attributes {stable_mosaic.version = 11 : i64} {
  func.func @_l2norm_kernel(%arg0: i32, %arg1: memref<8x128xf32, #tpu.memory_space<vmem>>, %arg2: memref<8x128xf32, #tpu.memory_space<vmem>>) attributes {dimension_semantics = [#tpu.dimension_semantics<parallel>], iteration_bounds = array<i64: 1>, scalar_prefetch = 0 : i64, scratch_operands = 0 : i64, tpu.core_type = #tpu.core_type<tc>, window_params = [{transform_indices = @transform_0, window_bounds = array<i64: 8, 128>}, {transform_indices = @transform_1, window_bounds = array<i64: 8, 128>}]} {
    %c0 = arith.constant 0 : index
    %c0_0 = arith.constant 0 : index
    %0 = vector.load %arg1[%c0, %c0_0] : memref<8x128xf32, #tpu.memory_space<vmem>>, vector<8x128xf32>
    %1 = arith.mulf %0, %0 : vector<8x128xf32>
    %cst = arith.constant dense<0.000000e+00> : vector<8xf32>
    %2 = vector.multi_reduction <add>, %1, %cst [1] : vector<8x128xf32> to vector<8xf32>
    %3 = vector.shape_cast %2 : vector<8xf32> to vector<8x1xf32>
    %cst_1 = arith.constant 1.000000e-24 : f32
    %4 = vector.broadcast %cst_1 : f32 to vector<8x1xf32>
    %5 = arith.maximumf %3, %4 : vector<8x1xf32>
    %6 = math.rsqrt %5 : vector<8x1xf32>
    %7 = vector.broadcast %6 : vector<8x1xf32> to vector<8x128xf32>
    %8 = arith.mulf %0, %7 : vector<8x128xf32>
    %c0_2 = arith.constant 0 : index
    %c0_3 = arith.constant 0 : index
    %9 = vector.load %arg2[%c0_2, %c0_3] : memref<8x128xf32, #tpu.memory_space<vmem>>, vector<8x128xf32>
    tpu.vector_store %arg2[%c0_2, %c0_3], %8 {strides = array<i32>} : memref<8x128xf32, #tpu.memory_space<vmem>>, vector<8x128xf32>,
    return
  }
  func.func @transform_0(%arg0: i32) -> (i32, i32) {
    %c0_i32 = arith.constant 0 : i32
    %c0_i32_0 = arith.constant 0 : i32
    return %arg0, %c0_i32 : i32, i32
  }
  func.func @transform_1(%arg0: i32) -> (i32, i32) {
    %c0_i32 = arith.constant 0 : i32
    %c0_i32_0 = arith.constant 0 : i32
    return %arg0, %c0_i32 : i32, i32
  }
}

</mosaic_0001>

<llo_original>
// kernel: tpu_custom_call.1
$region0: #{tpu_custom_call.1}
  #allocation0 [shape = 'u32[]', space=smem, size = 0x4, offset = 0x4, fixed_abs, tag = 'smem constant byte address 0x4 - core index']
  #allocation1 [shape = 'u32[144,128]{1,0:T(1,128)}', space=vmem, size = 0x12000, scoped, tag = 'internal scratch']
  %s0 = inlined_call_operand.hbm [shape: f32[8,128], index: 0, kind: input, shape index: {}]
  %s1 = inlined_call_operand.hbm [shape: f32[8,128], index: 1, kind: output, shape index: {}]
  %s2 = sld [smem:[#allocation0]]
  $region18: #{tpu_custom_call.1} parent=0
    _
  %s4 = ssub.s32 1, %s2
  %s5 = scalar_select 0, %s4, %s2
  $region1: #{tpu_custom_call.1} parent=0
    #allocation2 [shape = 'u8[4096]{0}', space=vmem, size = 0x1000, scoped, tag = 'input window, operand 0, single buffered']
    #allocation3 [shape = 's32[1]{0}', space=sflag, size = 0x4, scoped, tag = 'scoped memory for tpu_custom_call.1']
    #allocation4 [shape = 's32[1]{0}', space=sflag, size = 0x4, scoped, tag = 'scoped memory for tpu_custom_call.1']
    #allocation5 [shape = 'u8[4096]{0}', space=vmem, size = 0x1000, scoped, tag = 'output window, operand 0, single buffered']
    %6 = vsyncpa [#allocation3], 0
    %7 = vsyncpa [#allocation4], 0
    // Predicated region
    $region2: #{tpu_custom_call.1} parent=1 // pred_check
      _
    $region3: #{tpu_custom_call.1} parent=1 // pred_check_branch
      %9 = sbr.rel (0) target = $region5
    $region4: #{tpu_custom_call.1} parent=1 // pred_region
      %s11 = ssub.s32 128, 128
      %12 = vsyncadd [#allocation3], %s11
      %s14 = sshll.u32 [#allocation2], 4
      %s15 = int_to_ptr.vmem [resolvable:$true] %s14
      %17 = dma.hbm_to_vmem [thread:$0]  %s0, 128, %s15, [#allocation3]
    $region5: #{tpu_custom_call.1} parent=1 // pred_fallthru
      _
    // Predicated region
    $region6: #{tpu_custom_call.1} parent=1 // pred_check
      _
    $region7: #{tpu_custom_call.1} parent=1 // pred_check_branch
      %19 = sbr.rel (0) target = $region9
    $region8: #{tpu_custom_call.1} parent=1 // pred_region
      %20 = dma.done [#allocation3], 128
    $region9: #{tpu_custom_call.1} parent=1 // pred_fallthru
      _
    %v21 = vld [vmem:[#allocation2] sm:$0xff]
    %v22 = vmul.f32 %v21, %v21
    %23 = vadd.xlane.f32.xlu0 %v22
    %v24 = vpop.xlane.xlu0 %23
    %v25 = vmax.f32 %v24, 1e-24
    %v26 = vrsqrt.pop %v25
    %v27 = vmul.f32 %v21, %v26
    %28 = vst [vmem:[#allocation5] sm:$0xff] %v27
    // Predicated region
    $region10: #{tpu_custom_call.1} parent=1 // pred_check
      _
    $region11: #{tpu_custom_call.1} parent=1 // pred_check_branch
      %30 = sbr.rel (0) target = $region13
    $region12: #{tpu_custom_call.1} parent=1 // pred_region
      %s32 = ssub.s32 128, 128
      %33 = vsyncadd [#allocation4], %s32
      %s35 = sshll.u32 [#allocation5], 4
      %s36 = int_to_ptr.vmem [resolvable:$true] %s35
      %38 = dma.vmem_to_hbm [thread:$0]  %s36, 128, %s1, [#allocation4]
    $region13: #{tpu_custom_call.1} parent=1 // pred_fallthru
      _
    // Predicated region
    $region14: #{tpu_custom_call.1} parent=1 // pred_check
      _
    $region15: #{tpu_custom_call.1} parent=1 // pred_check_branch
      %40 = sbr.rel (0) target = $region17
    $region16: #{tpu_custom_call.1} parent=1 // pred_region
      %41 = dma.done [#allocation4], 128
    $region17: #{tpu_custom_call.1} parent=1 // pred_fallthru
      _
    %42 = vsyncpa [#allocation3], 1
    %43 = vsyncpa [#allocation4], 1

</llo_original>
